<compile_context>
chip_gen: v6e
topology: v6e:2x2x1
jax: 0.10.0
libtpu: 0.0.40
codegen_flags: <defaults>
</compile_context>

<pallas_src>
import functools

import numpy as np
import jax
import jax.numpy as jnp
from jax import lax
from jax.experimental import pallas as pl
from jax.experimental.pallas import tpu as pltpu

try:  # prefer scipy's C LAP solver when present
    from scipy.optimize import linear_sum_assignment as _scipy_lsa  # type: ignore
except Exception:  # pragma: no cover
    _scipy_lsa = None


def _round_up(x, m):
    return ((x + m - 1) // m) * m


# ----------------------------------------------------------------------------
# Pallas kernel: tiled MSE cost matrix
# ----------------------------------------------------------------------------
def _mse_cost_kernel(a_ref, b_ref, asq_ref, bsq_ref, cost_ref, *, inv_d):
    """cost[i, j] = clamp(||a_i||^2 - 2 a_i.b_j + ||b_j||^2, 0) / D, tiled over k.

    The output block is the accumulator (out index_map is k-invariant, so the
    block stays resident in VMEM across the whole k axis).
    """
    k = pl.program_id(2)

    @pl.when(k == 0)
    def _init():
        cost_ref[...] = jnp.zeros_like(cost_ref)

    # a @ b.T on the MXU, f32 accumulation directly into the resident output.
    # B is consumed un-transposed (contraction over the last dim of both
    # operands) so no wrapper-side transpose / extra HBM pass over B.
    cost_ref[...] += lax.dot_general(
        a_ref[...], b_ref[...],
        dimension_numbers=(((1,), (1,)), ((), ())),
        preferred_element_type=jnp.float32)

    @pl.when(k == pl.num_programs(2) - 1)
    def _epilogue():
        dist_sq = asq_ref[...] - 2.0 * cost_ref[...] + bsq_ref[...]
        cost_ref[...] = jnp.maximum(dist_sq, 0.0) * inv_d


def mse_cost_matrix(a, b, *, tm=512, tn=512, tk=512, use_bf16=False):
    """a, b: (N, D) float32 -> (N, N) float32 MSE distance matrix (Pallas, tiled)."""
    n, d = a.shape
    inv_d = 1.0 / float(d)

    # Tile constraints: tm multiple of 8 (sublane), tn/tk multiples of 128 (lane).
    tm = min(tm, _round_up(n, 8))
    tn = min(tn, _round_up(n, 128))
    tk = min(tk, _round_up(d, 128))

    # v7x megacore: make sure at least one "parallel" grid axis has >= 2 blocks
    # so both TensorCores get work (near-neutral on single-core v5e/v6e).
    if n >= 16 and tm >= _round_up(n, 8) and tn >= _round_up(n, 128):
        tm = max(8, _round_up((n + 1) // 2, 8))

    n_r = _round_up(n, tm)     # padded rows (A cells)
    n_c = _round_up(n, tn)     # padded cols (B cells)
    d_p = _round_up(d, tk)     # padded feature dim

    # Zero-padding is exact: padded features contribute 0 to dots and norms;
    # padded rows/cols are sliced away below.
    a_p = a if (n_r == n and d_p == d) else jnp.pad(a, ((0, n_r - n), (0, d_p - d)))
    b_p = b if (n_c == n and d_p == d) else jnp.pad(b, ((0, n_c - n), (0, d_p - d)))

    # Squared norms hoisted out of the k loop (one cheap fused pass, f32).
    a_sq = jnp.sum(a_p * a_p, axis=1, keepdims=True)          # (n_r, 1)
    b_sq = jnp.sum(b_p * b_p, axis=1)[None, :]                 # (1, n_c)

    if use_bf16:
        # ~3x MXU throughput / half the HBM traffic; accumulation stays f32.
        a_p = a_p.astype(jnp.bfloat16)
        b_p = b_p.astype(jnp.bfloat16)

    grid = (n_r // tm, n_c // tn, d_p // tk)
    kernel = functools.partial(_mse_cost_kernel, inv_d=inv_d)

    # Explicit VMEM budget: double-buffered A/B tiles + resident output block,
    # with headroom; capped well below v7x's 64 MiB physical VMEM.
    in_item = 2 if use_bf16 else 4
    vmem_bytes = (2 * tm * tk * in_item + 2 * tn * tk * in_item
                  + 2 * tm * tn * 4 + 2 * (tm + tn) * 4)
    vmem_limit = int(min(max(vmem_bytes * 5 // 4, 32 << 20), 48 << 20))

    cost_p = pl.pallas_call(
        kernel,
        out_shape=jax.ShapeDtypeStruct((n_r, n_c), jnp.float32),
        grid_spec=pltpu.PrefetchScalarGridSpec(
            num_scalar_prefetch=0,
            grid=grid,
            in_specs=[
                pl.BlockSpec((tm, tk), lambda i, j, k: (i, k)),   # A tile
                pl.BlockSpec((tn, tk), lambda i, j, k: (j, k)),   # B tile
                pl.BlockSpec((tm, 1), lambda i, j, k: (i, 0)),    # ||a||^2 (k-invariant)
                pl.BlockSpec((1, tn), lambda i, j, k: (0, j)),    # ||b||^2 (k-invariant)
            ],
            out_specs=pl.BlockSpec((tm, tn), lambda i, j, k: (i, j)),
        ),
        compiler_params=pltpu.CompilerParams(
            dimension_semantics=("parallel", "parallel", "arbitrary"),
            vmem_limit_bytes=vmem_limit),
        cost_estimate=pl.CostEstimate(
            flops=2 * n_r * n_c * d_p,
            transcendentals=0,
            bytes_accessed=in_item * ((n_c // tn) * n_r * d_p
                                      + (n_r // tm) * n_c * d_p)
                           + 4 * (n_r * n_c + n_r + n_c)),
    )(a_p, b_p, a_sq, b_sq)

    if n_r != n or n_c != n:
        cost_p = cost_p[:n, :n]
    return cost_p


# ----------------------------------------------------------------------------
# Host-side Hungarian (Jonker–Volgenant, O(n^3), inner loop vectorized in numpy).
# Equivalent to scipy.optimize.linear_sum_assignment for square cost matrices.
# ----------------------------------------------------------------------------
def _linear_sum_assignment_np(cost):
    cost = np.asarray(cost, dtype=np.float64)
    n = cost.shape[0]
    INF = 1e18
    u = np.zeros(n + 1)
    v = np.zeros(n + 1)
    p = np.zeros(n + 1, dtype=np.int64)    # p[j] = row matched to column j (1-indexed)
    way = np.zeros(n + 1, dtype=np.int64)
    for i in range(1, n + 1):
        p[0] = i
        j0 = 0
        minv = np.full(n + 1, INF)
        used = np.zeros(n + 1, dtype=bool)
        minv_1 = minv[1:]                  # views: updated in place
        way_1 = way[1:]
        while True:
            used[j0] = True
            i0 = p[j0]
            free = ~used[1:]
            cur = cost[i0 - 1, :] - u[i0] - v[1:]
            better = free & (cur < minv_1)
            minv_1[better] = cur[better]
            way_1[better] = j0
            masked = np.where(free, minv_1, INF)
            j1 = int(np.argmin(masked)) + 1
            delta = masked[j1 - 1]
            u[p[used]] += delta            # used columns have distinct matched rows
            v[used] -= delta
            minv_1[free] -= delta
            j0 = j1
            if p[j0] == 0:
                break
        while True:
            j1 = way[j0]
            p[j0] = p[j1]
            j0 = j1
            if j0 == 0:
                break
    col_for_row = np.zeros(n, dtype=np.int64)
    for j in range(1, n + 1):
        col_for_row[p[j] - 1] = j - 1
    return np.arange(n), col_for_row


def _linear_sum_assignment(cost):
    if _scipy_lsa is not None:
        r, c = _scipy_lsa(np.asarray(cost, dtype=np.float64))
        return np.asarray(r), np.asarray(c)
    return _linear_sum_assignment_np(cost)


# ----------------------------------------------------------------------------
# Module equivalent
# ----------------------------------------------------------------------------
class DifferentiableHungarianLoss:
    def __init__(self, distance_type="MSE", lambda_val=20):
        self.distance_type = distance_type
        self.lambda_val = lambda_val  # only used by the (host) backward in the reference

    def __call__(self, latent, inv_perm_A=None, inv_perm_B=None):
        assert latent.shape[0] == 2, "Latent input must be shape (2, N, ...)"
        num_cells = latent.shape[1]
        latent_dim = int(np.prod(latent.shape[2:]))

        latent_A = jnp.reshape(latent[0], (num_cells, latent_dim)).astype(jnp.float32)
        latent_B = jnp.reshape(latent[1], (num_cells, latent_dim)).astype(jnp.float32)

        if self.distance_type == "MSE":
            cost_matrix = mse_cost_matrix(latent_A, latent_B)       # Pallas kernel
        else:
            # TODO(synk): L1 distance path not implemented as a Pallas kernel.
            raise ValueError(f"Unsupported distance type: {self.distance_type}")

        # LAPSolver.forward: Hungarian assignment on host.
        cost_np = np.asarray(jax.device_get(cost_matrix))
        row_ind, col_ind = _linear_sum_assignment(cost_np)

        # Ideal permutation defaults to identity if not supplied.
        if inv_perm_A is None:
            inv_perm_A = np.arange(num_cells)
        if inv_perm_B is None:
            inv_perm_B = np.arange(num_cells)

        # HammingLoss in closed form.  predicted / ideal are {0,1} matrices, so
        #   errors.mean(0).sum() = (|P| + |T| - 2*|P ∩ T|) / N,  with |P| = N
        # (LAP assigns every row).  Avoids building two (N, N) one-hot matrices
        # on device and running a full (N, N) reduction.
        ideal_a = np.asarray(jax.device_get(inv_perm_A)).reshape(-1)
        ideal_b = np.asarray(jax.device_get(inv_perm_B)).reshape(-1)
        ideal_pairs = set(zip(ideal_a.tolist(), ideal_b.tolist()))
        matches = sum((int(r), int(c)) in ideal_pairs
                      for r, c in zip(row_ind.tolist(), col_ind.tolist()))
        loss_val = (num_cells + len(ideal_pairs) - 2 * matches) / float(num_cells)
        loss = jnp.asarray(loss_val, dtype=jnp.float32)

        return loss, (np.asarray(row_ind), np.asarray(col_ind))


# ----------------------------------------------------------------------------
# Demo / self-check
# ----------------------------------------------------------------------------
if __name__ == "__main__":
    key = jax.random.PRNGKey(0)
    k_lat, k_perm = jax.random.split(key)

    N = 16            # number of cells
    FEAT = (4, 4, 4)  # latent feature shape per cell -> D = 64
    latent = jax.random.normal(k_lat, (2, N) + FEAT, dtype=jnp.float32)

    inv_perm_B = np.asarray(jax.device_get(jax.random.permutation(k_perm, N)))
    inv_perm_A = np.arange(N)

    loss_fn = DifferentiableHungarianLoss(distance_type="MSE", lambda_val=20)
    loss, (row_ind, col_ind) = loss_fn(latent, inv_perm_A, inv_perm_B)
    loss = jax.block_until_ready(loss)

    # Numerical cross-check of the Pallas cost kernel vs numpy (small shape).
    A = np.asarray(jax.device_get(latent[0])).reshape(N, -1)
    B = np.asarray(jax.device_get(latent[1])).reshape(N, -1)
    D = A.shape[1]
    ref_cost = np.maximum(
        (A ** 2).sum(1, keepdims=True) - 2 * A @ B.T + (B ** 2).sum(1)[None, :], 0.0
    ) / D
    pallas_cost = np.asarray(
        jax.device_get(mse_cost_matrix(jnp.asarray(A), jnp.asarray(B))))
    assert pallas_cost.shape == (N, N)
    assert np.allclose(pallas_cost, ref_cost, rtol=1e-4, atol=1e-4)

    # Exercise the multi-tile path (multi-block i and k axes, with edge padding,
    # output-resident accumulation over k).
    N2, D2 = 320, 640
    k_a, k_b = jax.random.split(jax.random.PRNGKey(1))
    A2 = jax.random.normal(k_a, (N2, D2), dtype=jnp.float32)
    B2 = jax.random.normal(k_b, (N2, D2), dtype=jnp.float32)
    pallas_cost2 = np.asarray(jax.device_get(mse_cost_matrix(A2, B2)))
    A2n = np.asarray(jax.device_get(A2))
    B2n = np.asarray(jax.device_get(B2))
    ref_cost2 = np.maximum(
        (A2n ** 2).sum(1, keepdims=True) - 2 * A2n @ B2n.T
        + (B2n ** 2).sum(1)[None, :], 0.0) / D2
    assert pallas_cost2.shape == (N2, N2)
    assert np.allclose(pallas_cost2, ref_cost2, rtol=1e-3, atol=1e-3)

    # LAP solver sanity: numpy JV agrees with scipy (when available) on cost.
    r_np, c_np = _linear_sum_assignment_np(ref_cost)
    if _scipy_lsa is not None:
        r_sp, c_sp = _scipy_lsa(ref_cost)
        assert np.isclose(ref_cost[r_np, c_np].sum(), ref_cost[r_sp, c_sp].sum())

    # Hamming-loss cross-check against the dense reference formula.
    pred = np.zeros((N, N), np.float32)
    pred[row_ind, col_ind] = 1.0
    ideal = np.zeros((N, N), np.float32)
    ideal[inv_perm_A, inv_perm_B] = 1.0
    ref_loss = (pred * (1 - ideal) + (1 - pred) * ideal).mean(axis=0).sum()
    assert np.allclose(float(loss), ref_loss, rtol=1e-5, atol=1e-5)

    print("KERNEL_OK")
</pallas_src>

<mosaic_0001>
module attributes {stable_mosaic.version = 11 : i64} {
  func.func @_mse_cost_kernel(%arg0: i32, %arg1: i32, %arg2: i32, %arg3: memref<8x128xf32, #tpu.memory_space<vmem>>, %arg4: memref<128x128xf32, #tpu.memory_space<vmem>>, %arg5: memref<8x1xf32, #tpu.memory_space<vmem>>, %arg6: memref<1x128xf32, #tpu.memory_space<vmem>>, %arg7: memref<8x128xf32, #tpu.memory_space<vmem>>) attributes {dimension_semantics = [#tpu.dimension_semantics<parallel>, #tpu.dimension_semantics<parallel>, #tpu.dimension_semantics<arbitrary>], iteration_bounds = array<i64: 2, 1, 1>, scalar_prefetch = 0 : i64, scratch_operands = 0 : i64, tpu.core_type = #tpu.core_type<tc>, window_params = [{transform_indices = @transform_0, window_bounds = array<i64: 8, 128>}, {transform_indices = @transform_1, window_bounds = array<i64: 128, 128>}, {transform_indices = @transform_2, window_bounds = array<i64: 8, 1>}, {transform_indices = @transform_3, window_bounds = array<i64: 1, 128>}, {transform_indices = @transform_4, window_bounds = array<i64: 8, 128>}]} {
    %c0_i32 = arith.constant 0 : i32
    %0 = arith.cmpi eq, %arg2, %c0_i32 : i32
    %1 = arith.extui %0 : i1 to i32
    %c0_i32_0 = arith.constant 0 : i32
    %2 = arith.cmpi ne, %1, %c0_i32_0 : i32
    scf.if %2 {
      %cst_10 = arith.constant 0.000000e+00 : f32
      %12 = vector.broadcast %cst_10 : f32 to vector<8x128xf32>
      %c0_11 = arith.constant 0 : index
      %c0_12 = arith.constant 0 : index
      %13 = vector.load %arg7[%c0_11, %c0_12] : memref<8x128xf32, #tpu.memory_space<vmem>>, vector<8x128xf32>
      tpu.vector_store %arg7[%c0_11, %c0_12], %12 {strides = array<i32>} : memref<8x128xf32, #tpu.memory_space<vmem>>, vector<8x128xf32>,
    } else {
    }
    %c0 = arith.constant 0 : index
    %c0_1 = arith.constant 0 : index
    %3 = vector.load %arg7[%c0, %c0_1] : memref<8x128xf32, #tpu.memory_space<vmem>>, vector<8x128xf32>
    %c0_2 = arith.constant 0 : index
    %c0_3 = arith.constant 0 : index
    %4 = vector.load %arg3[%c0_2, %c0_3] : memref<8x128xf32, #tpu.memory_space<vmem>>, vector<8x128xf32>
    %c0_4 = arith.constant 0 : index
    %c0_5 = arith.constant 0 : index
    %5 = vector.load %arg4[%c0_4, %c0_5] : memref<128x128xf32, #tpu.memory_space<vmem>>, vector<128x128xf32>
    %cst = arith.constant dense<0.000000e+00> : vector<8x128xf32>
    %6 = tpu.matmul %4, %5, %cst {dimension_numbers = #tpu.dot_dimension_numbers<[1], [1], [0], [0], [0, 0, 1, 0], [], []>} : vector<8x128xf32>, vector<128x128xf32>, vector<8x128xf32> -> vector<8x128xf32>
    %7 = arith.addf %3, %6 : vector<8x128xf32>
    %c0_6 = arith.constant 0 : index
    %c0_7 = arith.constant 0 : index
    %8 = vector.load %arg7[%c0_6, %c0_7] : memref<8x128xf32, #tpu.memory_space<vmem>>, vector<8x128xf32>
    tpu.vector_store %arg7[%c0_6, %c0_7], %7 {strides = array<i32>} : memref<8x128xf32, #tpu.memory_space<vmem>>, vector<8x128xf32>,
    %c0_i32_8 = arith.constant 0 : i32
    %9 = arith.cmpi eq, %arg2, %c0_i32_8 : i32
    %10 = arith.extui %9 : i1 to i32
    %c0_i32_9 = arith.constant 0 : i32
    %11 = arith.cmpi ne, %10, %c0_i32_9 : i32
    scf.if %11 {
      %c0_10 = arith.constant 0 : index
      %c0_11 = arith.constant 0 : index
      %12 = vector.load %arg5[%c0_10, %c0_11] : memref<8x1xf32, #tpu.memory_space<vmem>>, vector<8x1xf32>
      %c0_12 = arith.constant 0 : index
      %c0_13 = arith.constant 0 : index
      %13 = vector.load %arg7[%c0_12, %c0_13] : memref<8x128xf32, #tpu.memory_space<vmem>>, vector<8x128xf32>
      %cst_14 = arith.constant 2.000000e+00 : f32
      %14 = vector.broadcast %cst_14 : f32 to vector<8x128xf32>
      %15 = arith.mulf %14, %13 : vector<8x128xf32>
      %16 = vector.broadcast %12 : vector<8x1xf32> to vector<8x128xf32>
      %17 = arith.subf %16, %15 : vector<8x128xf32>
      %c0_15 = arith.constant 0 : index
      %c0_16 = arith.constant 0 : index
      %18 = vector.load %arg6[%c0_15, %c0_16] : memref<1x128xf32, #tpu.memory_space<vmem>>, vector<1x128xf32>
      %19 = vector.broadcast %18 : vector<1x128xf32> to vector<8x128xf32>
      %20 = arith.addf %17, %19 : vector<8x128xf32>
      %cst_17 = arith.constant 0.000000e+00 : f32
      %21 = vector.broadcast %cst_17 : f32 to vector<8x128xf32>
      %22 = arith.maximumf %20, %21 : vector<8x128xf32>
      %cst_18 = arith.constant 1.562500e-02 : f32
      %23 = vector.broadcast %cst_18 : f32 to vector<8x128xf32>
      %24 = arith.mulf %22, %23 : vector<8x128xf32>
      %c0_19 = arith.constant 0 : index
      %c0_20 = arith.constant 0 : index
      %25 = vector.load %arg7[%c0_19, %c0_20] : memref<8x128xf32, #tpu.memory_space<vmem>>, vector<8x128xf32>
      tpu.vector_store %arg7[%c0_19, %c0_20], %24 {strides = array<i32>} : memref<8x128xf32, #tpu.memory_space<vmem>>, vector<8x128xf32>,
    } else {
    }
    return
  }
  func.func @transform_0(%arg0: i32, %arg1: i32, %arg2: i32) -> (i32, i32) {
    %c0_i32 = arith.constant 0 : i32
    return %arg0, %arg2 : i32, i32
  }
  func.func @transform_1(%arg0: i32, %arg1: i32, %arg2: i32) -> (i32, i32) {
    %c0_i32 = arith.constant 0 : i32
    return %arg1, %arg2 : i32, i32
  }
  func.func @transform_2(%arg0: i32, %arg1: i32, %arg2: i32) -> (i32, i32) {
    %c0_i32 = arith.constant 0 : i32
    %c0_i32_0 = arith.constant 0 : i32
    return %arg0, %c0_i32 : i32, i32
  }
  func.func @transform_3(%arg0: i32, %arg1: i32, %arg2: i32) -> (i32, i32) {
    %c0_i32 = arith.constant 0 : i32
    %c0_i32_0 = arith.constant 0 : i32
    return %c0_i32, %arg1 : i32, i32
  }
  func.func @transform_4(%arg0: i32, %arg1: i32, %arg2: i32) -> (i32, i32) {
    %c0_i32 = arith.constant 0 : i32
    return %arg0, %arg1 : i32, i32
  }
}

</mosaic_0001>

<llo_original>
// kernel: tpu_custom_call.1
$region0: #{tpu_custom_call.1}
  #allocation0 [shape = 'u32[]', space=smem, size = 0x4, offset = 0x4, fixed_abs, tag = 'smem constant byte address 0x4 - core index']
  #allocation1 [shape = 'u32[144,128]{1,0:T(1,128)}', space=vmem, size = 0x12000, scoped, tag = 'internal scratch']
  %s0 = inlined_call_operand.vmem [shape: f32[16,128], index: 0, kind: input, shape index: {}]
  %s1 = inlined_call_operand.hbm [shape: f32[128,128], index: 1, kind: input, shape index: {}]
  %s2 = inlined_call_operand.vmem [shape: f32[16,1], index: 2, kind: input, shape index: {}]
  %s3 = inlined_call_operand.vmem [shape: f32[1,128], index: 3, kind: input, shape index: {}]
  %s4 = inlined_call_operand.hbm [shape: f32[16,128], index: 4, kind: output, shape index: {}]
  %s5 = sld [smem:[#allocation0]]
  $region61: #{tpu_custom_call.1} parent=0
    _
  %s7 = ssub.s32 1, %s5
  %s8 = scalar_select 0, %s7, %s5
  $region1: #{tpu_custom_call.1} parent=0
    #allocation2 [shape = 'u8[65536]{0}', space=vmem, size = 0x10000, scoped, tag = 'input window, operand 1, single buffered']
    #allocation3 [shape = 's32[2]{0}', space=sflag, size = 0x8, scoped, tag = 'scoped memory for tpu_custom_call.1']
    #allocation4 [shape = 's32[2]{0}', space=sflag, size = 0x8, scoped, tag = 'scoped memory for tpu_custom_call.1']
    #allocation5 [shape = 'u8[8192]{0}', space=vmem, size = 0x2000, scoped, tag = 'output window, operand 0']
    %9 = vsyncpa [#allocation3], 0
    %10 = vsyncpa [#allocation4], 0
    %s11 = scalar_lea.sflag [#allocation4], 1
    %12 = vsyncpa %s11, 0
    loop: start=0, step=1, limit=4
    $region2: #{tpu_custom_call.1} parent=1 // loop_pre_header
      _
    $region3: #{tpu_custom_call.1} parent=1 // loop_header
      %s14 = sphi 0, %s18
      %p15 = scmp.ge.s32.totalorder %s14, 4
      %s21 = sphi 0, %s40
      %s22 = sphi 0, %s36
      %s23 = sphi 0, %s32
      %s24 = sphi 0, %s21
      %s25 = sphi 0, %s22
      %s26 = sphi 0, %s23
      %s27 = sphi 0, %s24
      %s28 = sphi 0, %s25
      %s29 = sphi 0, %s26
      %s45 = sphi 0, %s47
      %s48 = sphi 0, %s45
      %s49 = sphi 0, %s48
      %s65 = sphi 0, %s49
      %s73 = sphi 0, %s75
      %s76 = sphi 0, %s73
      %s77 = sphi 0, %s76
      %s93 = sphi 0, %s77
      %s99 = sphi 0, %s101
      %s102 = sphi 0, %s99
      %s103 = sphi 0, %s102
      %s119 = sphi 0, %s103
      %s125 = sphi 0, %s127
      %s128 = sphi 0, %s125
      %s129 = sphi 0, %s128
      %s145 = sphi 0, %s129
      %s153 = sphi 0, %s155
      %s156 = sphi 0, %s153
      %s157 = sphi 0, %s156
      %s173 = sphi 0, %s157
    $region4: #{tpu_custom_call.1} parent=1 // loop_header_branch
      %17 = sbr.rel (%p15) target = $region8
    $region5: #{tpu_custom_call.1} parent=1 // loop_body
      %s19 = ssub.s32 %s14, 1
      %s20 = ssub.s32 %s14, 2
      %s30 = sadd.s32 1, %s23
      %p31 = scmp.ge.s32.totalorder %s30, 1
      %s32 = scalar_select %p31, 0, %s30
      %s33 = sadd.s32 1, %s22
      %s34 = scalar_select %p31, %s33, %s22
      %p35 = scmp.ge.s32.totalorder %s34, 1
      %s36 = scalar_select %p35, 0, %s34
      %s37 = sadd.s32 1, %s21
      %s38 = scalar_select %p35, %s37, %s21
      %p39 = scmp.ge.s32.totalorder %s38, 2
      %s40 = scalar_select %p39, 0, %s38
      %s41 = ssub.s32 %s21, %s40
      %s42 = ssub.s32 %s23, %s32
      %s43 = sor.u32 %s41, %s42
      %p44 = scmp.eq.s32.totalorder %s43, 0
      %s46 = sadd.s32 %s45, 1
      %s47 = scalar_select %p44, %s45, %s46
      %p50 = pneg %p44
      %p51 = scmp.eq.s32.totalorder %s14, 1
      %p52 = por %p50, %p51
      %p53 = scmp.ne.s32.totalorder %s45, %s48
      %p54 = scmp.eq.s32.totalorder %s14, 0
      %p55 = por %p53, %p54
      %p56 = scmp.ne.s32.totalorder %s45, %s48
      %p57 = scmp.eq.s32.totalorder %s19, 1
      %p58 = por %p56, %p57
      %p59 = scmp.ne.s32.totalorder %s48, %s49
      %p60 = scmp.eq.s32.totalorder %s19, 0
      %p61 = por %p59, %p60
      %p62 = scmp.ne.s32.totalorder %s48, %s49
      %p63 = scmp.eq.s32.totalorder %s20, 1
      %p64 = por %p62, %p63
      %p66 = scmp.ne.s32.totalorder %s49, %s65
      %p67 = scmp.eq.s32.totalorder %s20, 0
      %p68 = por %p66, %p67
      %s69 = ssub.s32 %s22, %s36
      %s70 = ssub.s32 %s23, %s32
      %s71 = sor.u32 %s69, %s70
      %p72 = scmp.eq.s32.totalorder %s71, 0
      %s74 = sadd.s32 %s73, 1
      %s75 = scalar_select %p72, %s73, %s74
      %p78 = pneg %p72
      %p79 = scmp.eq.s32.totalorder %s14, 1
      %p80 = por %p78, %p79
      %p81 = scmp.ne.s32.totalorder %s73, %s76
      %p82 = scmp.eq.s32.totalorder %s14, 0
      %p83 = por %p81, %p82
      %p84 = scmp.ne.s32.totalorder %s73, %s76
      %p85 = scmp.eq.s32.totalorder %s19, 1
      %p86 = por %p84, %p85
      %p87 = scmp.ne.s32.totalorder %s76, %s77
      %p88 = scmp.eq.s32.totalorder %s19, 0
      %p89 = por %p87, %p88
      %p90 = scmp.ne.s32.totalorder %s76, %s77
      %p91 = scmp.eq.s32.totalorder %s20, 1
      %p92 = por %p90, %p91
      %p94 = scmp.ne.s32.totalorder %s77, %s93
      %p95 = scmp.eq.s32.totalorder %s20, 0
      %p96 = por %p94, %p95
      %s97 = ssub.s32 %s21, %s40
      %p98 = scmp.eq.s32.totalorder %s97, 0
      %s100 = sadd.s32 %s99, 1
      %s101 = scalar_select %p98, %s99, %s100
      %p104 = pneg %p98
      %p105 = scmp.eq.s32.totalorder %s14, 1
      %p106 = por %p104, %p105
      %p107 = scmp.ne.s32.totalorder %s99, %s102
      %p108 = scmp.eq.s32.totalorder %s14, 0
      %p109 = por %p107, %p108
      %p110 = scmp.ne.s32.totalorder %s99, %s102
      %p111 = scmp.eq.s32.totalorder %s19, 1
      %p112 = por %p110, %p111
      %p113 = scmp.ne.s32.totalorder %s102, %s103
      %p114 = scmp.eq.s32.totalorder %s19, 0
      %p115 = por %p113, %p114
      %p116 = scmp.ne.s32.totalorder %s102, %s103
      %p117 = scmp.eq.s32.totalorder %s20, 1
      %p118 = por %p116, %p117
      %p120 = scmp.ne.s32.totalorder %s103, %s119
      %p121 = scmp.eq.s32.totalorder %s20, 0
      %p122 = por %p120, %p121
      %s123 = ssub.s32 %s22, %s36
      %p124 = scmp.eq.s32.totalorder %s123, 0
      %s126 = sadd.s32 %s125, 1
      %s127 = scalar_select %p124, %s125, %s126
      %p130 = pneg %p124
      %p131 = scmp.eq.s32.totalorder %s14, 1
      %p132 = por %p130, %p131
      %p133 = scmp.ne.s32.totalorder %s125, %s128
      %p134 = scmp.eq.s32.totalorder %s14, 0
      %p135 = por %p133, %p134
      %p136 = scmp.ne.s32.totalorder %s125, %s128
      %p137 = scmp.eq.s32.totalorder %s19, 1
      %p138 = por %p136, %p137
      %p139 = scmp.ne.s32.totalorder %s128, %s129
      %p140 = scmp.eq.s32.totalorder %s19, 0
      %p141 = por %p139, %p140
      %p142 = scmp.ne.s32.totalorder %s128, %s129
      %p143 = scmp.eq.s32.totalorder %s20, 1
      %p144 = por %p142, %p143
      %p146 = scmp.ne.s32.totalorder %s129, %s145
      %p147 = scmp.eq.s32.totalorder %s20, 0
      %p148 = por %p146, %p147
      %s149 = ssub.s32 %s21, %s40
      %s150 = ssub.s32 %s22, %s36
      %s151 = sor.u32 %s149, %s150
      %p152 = scmp.eq.s32.totalorder %s151, 0
      %s154 = sadd.s32 %s153, 1
      %s155 = scalar_select %p152, %s153, %s154
      %p158 = pneg %p152
      %p159 = scmp.eq.s32.totalorder %s14, 1
      %p160 = por %p158, %p159
      %p161 = scmp.ne.s32.totalorder %s153, %s156
      %p162 = scmp.eq.s32.totalorder %s14, 0
      %p163 = por %p161, %p162
      %p164 = scmp.ne.s32.totalorder %s153, %s156
      %p165 = scmp.eq.s32.totalorder %s19, 1
      %p166 = por %p164, %p165
      %p167 = scmp.ne.s32.totalorder %s156, %s157
      %p168 = scmp.eq.s32.totalorder %s19, 0
      %p169 = por %p167, %p168
      %p170 = scmp.ne.s32.totalorder %s156, %s157
      %p171 = scmp.eq.s32.totalorder %s20, 1
      %p172 = por %p170, %p171
      %p174 = scmp.ne.s32.totalorder %s157, %s173
      %p175 = scmp.eq.s32.totalorder %s20, 0
      %p176 = por %p174, %p175
      %p177 = scmp.le.s32.totalorder 1, %s14
      %p178 = scmp.lt.s32.totalorder %s14, 3
      %p179 = pnand %p177, %p178
      %p180 = pneg %p179
      // Predicated region
      $region9: #{tpu_custom_call.1} parent=5 // pred_check
        _
      $region10: #{tpu_custom_call.1} parent=5 // pred_check_branch
        %182 = sbr.rel (%p179) target = $region12
      $region11: #{tpu_custom_call.1} parent=5 // pred_region
        %s183 = ssub.s32 %s14, 1
        // Predicated region
        $region13: #{tpu_custom_call.1} parent=11 // pred_check
          %p184 = pneg %p89
        $region14: #{tpu_custom_call.1} parent=11 // pred_check_branch
          %186 = sbr.rel (%p184) target = $region16
        $region15: #{tpu_custom_call.1} parent=11 // pred_region
          %s187 = smul.u32 16, %s25
          %s189 = ssub.s32 2048, 2048
          %190 = vsyncadd [#allocation3], %s189
          %s191 = sadd.s32 %s26, %s187
          %s192 = smul.addr %s191, 128
          %s193 = scalar_lea.hbm %s1, %s192
          %s194 = sshll.u32 [#allocation2], 4
          %s195 = int_to_ptr.vmem [resolvable:$true] %s194
          %200 = dma.hbm_to_vmem [thread:$0]  %s193, 2048, %s195, [#allocation3], 128, 128, 8
        $region16: #{tpu_custom_call.1} parent=11 // pred_fallthru
          _
        // Predicated region
        $region17: #{tpu_custom_call.1} parent=11 // pred_check
          %p201 = pneg %p141
        $region18: #{tpu_custom_call.1} parent=11 // pred_check_branch
          %203 = sbr.rel (%p201) target = $region20
        $region19: #{tpu_custom_call.1} parent=11 // pred_region
          %p204 = scmp.lt.s32.totalorder %s25, 0
          %s205 = scalar_select %p204, %s25, 0
          %s206 = scalar_lea.vmem %s3, %s205
        $region20: #{tpu_custom_call.1} parent=11 // pred_fallthru
          _
      $region12: #{tpu_custom_call.1} parent=5 // pred_fallthru
        _
      %p207 = scmp.lt.s32.totalorder %s14, 2
      // Predicated region
      $region21: #{tpu_custom_call.1} parent=5 // pred_check
        %p208 = pneg %p207
      $region22: #{tpu_custom_call.1} parent=5 // pred_check_branch
        %210 = sbr.rel (%p208) target = $region24
      $region23: #{tpu_custom_call.1} parent=5 // pred_region
        // Predicated region
        $region25: #{tpu_custom_call.1} parent=23 // pred_check
          %p211 = pneg %p55
        $region26: #{tpu_custom_call.1} parent=23 // pred_check_branch
          %213 = sbr.rel (%p211) target = $region28
        $region27: #{tpu_custom_call.1} parent=23 // pred_region
          %p214 = scmp.lt.s32.totalorder %s21, 1
          %s215 = scalar_select %p214, %s21, 1
          %p216 = scmp.lt.s32.totalorder %s23, 0
          %s217 = scalar_select %p216, %s23, 0
          %s218 = sadd.s32 %s217, %s215
          %s219 = smul.addr %s218, 8
          %s220 = scalar_lea.vmem %s0, %s219
        $region28: #{tpu_custom_call.1} parent=23 // pred_fallthru
          _
        // Predicated region
        $region29: #{tpu_custom_call.1} parent=23 // pred_check
          %p221 = pneg %p109
        $region30: #{tpu_custom_call.1} parent=23 // pred_check_branch
          %223 = sbr.rel (%p221) target = $region32
        $region31: #{tpu_custom_call.1} parent=23 // pred_region
          %p224 = scmp.lt.s32.totalorder %s21, 1
          %s225 = scalar_select %p224, %s21, 1
          %s226 = smul.addr %s225, 8
          %s227 = scalar_lea.vmem %s2, %s226
        $region32: #{tpu_custom_call.1} parent=23 // pred_fallthru
          _
      $region24: #{tpu_custom_call.1} parent=5 // pred_fallthru
        _
      %p228 = scmp.le.s32.totalorder 1, %s14
      %p229 = scmp.lt.s32.totalorder %s14, 3
      %p230 = pnand %p228, %p229
      %p231 = pneg %p230
      // Predicated region
      $region33: #{tpu_custom_call.1} parent=5 // pred_check
        _
      $region34: #{tpu_custom_call.1} parent=5 // pred_check_branch
        %233 = sbr.rel (%p230) target = $region36
      $region35: #{tpu_custom_call.1} parent=5 // pred_region
        %s234 = ssub.s32 %s14, 1
        // Predicated region
        $region37: #{tpu_custom_call.1} parent=35 // pred_check
          %p235 = pneg %p89
        $region38: #{tpu_custom_call.1} parent=35 // pred_check_branch
          %237 = sbr.rel (%p235) target = $region40
        $region39: #{tpu_custom_call.1} parent=35 // pred_region
          %238 = dma.done [#allocation3], 2048
        $region40: #{tpu_custom_call.1} parent=35 // pred_fallthru
          _
        %p239 = scmp.lt.s32.totalorder %s24, 1
        %s240 = scalar_select %p239, %s24, 1
        %p241 = scmp.lt.s32.totalorder %s26, 0
        %s242 = scalar_select %p241, %s26, 0
        %s243 = sadd.s32 %s242, %s240
        %s244 = smul.addr %s243, 8
        %s245 = scalar_lea.vmem %s0, %s244
        %p246 = pneg %p61
        %p247 = pneg %p58
        %p248 = pneg %p89
        %p249 = pneg %p86
        %p250 = scmp.lt.s32.totalorder %s24, 1
        %s251 = scalar_select %p250, %s24, 1
        %s252 = smul.addr %s251, 8
        %s253 = scalar_lea.vmem %s2, %s252
        %p254 = pneg %p115
        %p255 = pneg %p112
        %p256 = scmp.lt.s32.totalorder %s25, 0
        %s257 = scalar_select %p256, %s25, 0
        %s258 = scalar_lea.vmem %s3, %s257
        %p259 = pneg %p141
        %p260 = pneg %p138
        %p261 = pneg %p169
        %p262 = pneg %p166
        %s263 = sand.u32 %s156, 1
        %s264 = scalar_lea.sflag [#allocation4], %s263
        %s265 = sand.u32 %s156, 1
        %s266 = smul.addr %s265, 8
        %s267 = scalar_lea.vmem [#allocation5], %s266
        %p268 = scmp.lt.s32.totalorder %s24, 1
        %s269 = scalar_select %p268, %s24, 1
        %p270 = scmp.lt.s32.totalorder %s26, 0
        %s271 = scalar_select %p270, %s26, 0
        %s272 = sadd.s32 %s271, %s269
        %s273 = smul.addr %s272, 8
        %s274 = scalar_lea.vmem %s0, %s273
        %s275 = smul.u32 16, %s25
        %p276 = scmp.lt.s32.totalorder %s24, 1
        %s277 = scalar_select %p276, %s24, 1
        %s278 = smul.addr %s277, 8
        %s279 = scalar_lea.vmem %s2, %s278
        %p280 = scmp.lt.s32.totalorder %s25, 0
        %s281 = scalar_select %p280, %s25, 0
        %s282 = scalar_lea.vmem %s3, %s281
        %p283 = scmp.eq.s32.totalorder %s26, 0
        // Predicated region
        $region41: #{tpu_custom_call.1} parent=35 // pred_check
          %p284 = pneg %p283
        $region42: #{tpu_custom_call.1} parent=35 // pred_check_branch
          %286 = sbr.rel (%p284) target = $region44
        $region43: #{tpu_custom_call.1} parent=35 // pred_region
          %287 = vst [vmem:[%s267] sm:$0xff] 0.0
        $region44: #{tpu_custom_call.1} parent=35 // pred_fallthru
          _
        %v288 = vld [vmem:[%s267] sm:$0xff]
        %v289 = vld [vmem:[%s274] sm:$0xff]
        %v290 = vld [vmem:[#allocation2] sm:$0xff]
        %v291 = vld [vmem:[#allocation2 + $0x8] sm:$0xff]
        %v292 = vld [vmem:[#allocation2 + $0x10] sm:$0xff]
        %v293 = vld [vmem:[#allocation2 + $0x18] sm:$0xff]
        %v294 = vld [vmem:[#allocation2 + $0x20] sm:$0xff]
        %v295 = vld [vmem:[#allocation2 + $0x28] sm:$0xff]
        %v296 = vld [vmem:[#allocation2 + $0x30] sm:$0xff]
        %v297 = vld [vmem:[#allocation2 + $0x38] sm:$0xff]
        %v298 = vld [vmem:[#allocation2 + $0x40] sm:$0xff]
        %v299 = vld [vmem:[#allocation2 + $0x48] sm:$0xff]
        %v300 = vld [vmem:[#allocation2 + $0x50] sm:$0xff]
        %v301 = vld [vmem:[#allocation2 + $0x58] sm:$0xff]
        %v302 = vld [vmem:[#allocation2 + $0x60] sm:$0xff]
        %v303 = vld [vmem:[#allocation2 + $0x68] sm:$0xff]
        %v304 = vld [vmem:[#allocation2 + $0x70] sm:$0xff]
        %v305 = vld [vmem:[#allocation2 + $0x78] sm:$0xff]
        %306 = vmatprep.subr.mxu0 0.0
        %307 = vmatpush1.xpose.msra.mxu0 %v305
        %308 = vmatprep.subr.mxu0 0.0
        %309 = vmatpush1.xpose.msra.mxu0 %v304
        %310 = vmatprep.subr.mxu0 0.0
        %311 = vmatpush1.xpose.msra.mxu0 %v303
        %312 = vmatprep.subr.mxu0 0.0
        %313 = vmatpush1.xpose.msra.mxu0 %v302
        %314 = vmatprep.subr.mxu0 0.0
        %315 = vmatpush1.xpose.msra.mxu0 %v301
        %316 = vmatprep.subr.mxu0 0.0
        %317 = vmatpush1.xpose.msra.mxu0 %v300
        %318 = vmatprep.subr.mxu0 0.0
        %319 = vmatpush1.xpose.msra.mxu0 %v299
        %320 = vmatprep.subr.mxu0 0.0
        %321 = vmatpush1.xpose.msra.mxu0 %v298
        %322 = vmatprep.subr.mxu0 0.0
        %323 = vmatpush1.xpose.msra.mxu0 %v297
        %324 = vmatprep.subr.mxu0 0.0
        %325 = vmatpush1.xpose.msra.mxu0 %v296
        %326 = vmatprep.subr.mxu0 0.0
        %327 = vmatpush1.xpose.msra.mxu0 %v295
        %328 = vmatprep.subr.mxu0 0.0
        %329 = vmatpush1.xpose.msra.mxu0 %v294
        %330 = vmatprep.subr.mxu0 0.0
        %331 = vmatpush1.xpose.msra.mxu0 %v293
        %332 = vmatprep.subr.mxu0 0.0
        %333 = vmatpush1.xpose.msra.mxu0 %v292
        %334 = vmatprep.subr.mxu0 0.0
        %335 = vmatpush1.xpose.msra.mxu0 %v291
        %336 = vmatprep.subr.mxu0 0.0
        %337 = vmatpush1.xpose.msra.mxu0 %v290
        %338 = vmatprep.subr.mxu0 0.0
        %339 = vmatpush2.xpose.msra.mxu0 0.0
        %340 = vmatprep.subr.mxu0 0.0
        %341 = vmatpush2.xpose.msra.mxu0 0.0
        %342 = vmatprep.subr.mxu0 0.0
        %343 = vmatpush2.xpose.msra.mxu0 0.0
        %344 = vmatprep.subr.mxu0 0.0
        %345 = vmatpush2.xpose.msra.mxu0 0.0
        %346 = vmatprep.subr.mxu0 0.0
        %347 = vmatpush2.xpose.msra.mxu0 0.0
        %348 = vmatprep.subr.mxu0 0.0
        %349 = vmatpush2.xpose.msra.mxu0 0.0
        %350 = vmatprep.subr.mxu0 0.0
        %351 = vmatpush2.xpose.msra.mxu0 0.0
        %352 = vmatprep.subr.mxu0 0.0
        %353 = vmatpush2.xpose.msra.mxu0 0.0
        %354 = vmatprep.subr.mxu0 0.0
        %355 = vmatpush2.xpose.msra.mxu0 0.0
        %356 = vmatprep.subr.mxu0 0.0
        %357 = vmatpush2.xpose.msra.mxu0 0.0
        %358 = vmatprep.subr.mxu0 0.0
        %359 = vmatpush2.xpose.msra.mxu0 0.0
        %360 = vmatprep.subr.mxu0 0.0
        %361 = vmatpush2.xpose.msra.mxu0 0.0
        %362 = vmatprep.subr.mxu0 0.0
        %363 = vmatpush2.xpose.msra.mxu0 0.0
        %364 = vmatprep.subr.mxu0 0.0
        %365 = vmatpush2.xpose.msra.mxu0 0.0
        %366 = vmatprep.subr.mxu0 0.0
        %367 = vmatpush2.xpose.msra.mxu0 0.0
        %368 = vmatprep.subr.mxu0 0.0
        %369 = vmatpush2.xpose.msra.mxu0 0.0
        %370 = vmatprep.mubr.f32.mxu0 0.0
        %371 = vmatmul.mubr.f32.gmra.mxu0 %v289
        %v372 = vpop.f32.mrf.mxu0
        %v373 = vadd.f32 0.0, %v372
        %v374 = vpop.f32.mrf.mxu0
        %375 = vdwg.mxu0
        %v376 = vadd.f32 %v288, %v373
        %377 = vst [vmem:[%s267] sm:$0xff] %v376
        // Predicated region
        $region45: #{tpu_custom_call.1} parent=35 // pred_check
          %p378 = pneg %p283
        $region46: #{tpu_custom_call.1} parent=35 // pred_check_branch
          %380 = sbr.rel (%p378) target = $region48
        $region47: #{tpu_custom_call.1} parent=35 // pred_region
          %v381 = vld [vmem:[%s279] sm:$0xff]
          %v382 = vld [vmem:[%s267] sm:$0xff]
          %v383 = vmul.f32 %v382, 2.0
          %385 = vset.pattern.permute.xlu0 0
          %386 = vperm.xlu0 %385, %v381
          %v387 = vpop.permute.xlu0 %386
          %v389 = vsub.f32 %v387, %v383
          %v390 = vld [vmem:[%s282] sm:$0x1]
          %v392 = vlaneseq
          %v393 = vshrl.u32 %v392, 7
          %v394 = vsub.s32 0, %v393
          %v395 = vrot.slane %v390, %v394
          %v397 = vadd.f32 %v389, %v395
          %v398 = vmax.f32 %v397, 0.0
          %v399 = vmul.f32 %v398, 0.015625
          %400 = vst [vmem:[%s267] sm:$0xff] %v399
        $region48: #{tpu_custom_call.1} parent=35 // pred_fallthru
          _
        %s401 = sand.u32 %s156, 1
        %s402 = scalar_lea.sflag [#allocation4], %s401
        %s403 = sand.u32 %s156, 1
        %s404 = smul.addr %s403, 8
        %s405 = scalar_lea.vmem [#allocation5], %s404
        // Predicated region
        $region49: #{tpu_custom_call.1} parent=35 // pred_check
          %p406 = pneg %p166
        $region50: #{tpu_custom_call.1} parent=35 // pred_check_branch
          %408 = sbr.rel (%p406) target = $region52
        $region51: #{tpu_custom_call.1} parent=35 // pred_region
          %s410 = ssub.s32 128, 128
          %411 = vsyncadd %s402, %s410
          %s412 = sadd.s32 %s25, %s24
          %s413 = smul.addr %s412, 128
          %s414 = scalar_lea.hbm %s4, %s413
          %s416 = sshll.u32 %s405, 4
          %s417 = int_to_ptr.vmem [resolvable:$true] %s416
          %419 = dma.vmem_to_hbm [thread:$0]  %s417, 128, %s414, %s402
        $region52: #{tpu_custom_call.1} parent=35 // pred_fallthru
          _
      $region36: #{tpu_custom_call.1} parent=5 // pred_fallthru
        _
      %p420 = scmp.le.s32.totalorder 2, %s14
      // Predicated region
      $region53: #{tpu_custom_call.1} parent=5 // pred_check
        %p421 = pneg %p420
      $region54: #{tpu_custom_call.1} parent=5 // pred_check_branch
        %423 = sbr.rel (%p421) target = $region56
      $region55: #{tpu_custom_call.1} parent=5 // pred_region
        %s424 = ssub.s32 %s14, 2
        // Predicated region
        $region57: #{tpu_custom_call.1} parent=55 // pred_check
          %p425 = pneg %p172
        $region58: #{tpu_custom_call.1} parent=55 // pred_check_branch
          %427 = sbr.rel (%p425) target = $region60
        $region59: #{tpu_custom_call.1} parent=55 // pred_region
          %s428 = sand.u32 %s157, 1
          %s429 = scalar_lea.sflag [#allocation4], %s428
          %s430 = sand.u32 %s157, 1
          %s431 = smul.addr %s430, 8
          %s432 = scalar_lea.vmem [#allocation5], %s431
          %433 = dma.done %s429, 128
        $region60: #{tpu_custom_call.1} parent=55 // pred_fallthru
          _
      $region56: #{tpu_custom_call.1} parent=5 // pred_fallthru
        _
    $region6: #{tpu_custom_call.1} parent=1 // loop_footer
      %s18 = sadd.s32 1, %s14
    $region7: #{tpu_custom_call.1} parent=1 // loop_footer_branch
      %13 = sbr.rel target = $region3
    $region8: #{tpu_custom_call.1} parent=1 // loop_exit
      _
    %434 = vsyncpa [#allocation3], 1
    %s435 = scalar_lea.sflag [#allocation3], 1
    %436 = vsyncpa %s435, 1
    %437 = vsyncpa [#allocation4], 1
    %s438 = scalar_lea.sflag [#allocation4], 1
    %439 = vsyncpa %s438, 1

</llo_original>
